<compile_context>
chip_gen: v7x
topology: tpu7x:2x2x1
jax: 0.10.0
libtpu: 0.0.40
codegen_flags: <defaults>
</compile_context>

<pallas_src>
import jax
import jax.numpy as jnp
import numpy as np
from jax.experimental import pallas as pl
from jax.experimental.pallas import tpu as pltpu


def _round_up(x: int, m: int) -> int:
    return ((x + m - 1) // m) * m


def reward_mlp_kernel(s_ref, a_ref, sp_ref,
                      w1s_ref, w1a_ref, w1sp_ref, b1_ref,
                      w2_ref, b2_ref, w3_ref, b3_ref,
                      o_ref):
    # Layer 1: concat([s, a, sp]) @ w1 computed as three partial bf16 MXU dots
    # accumulating into one f32 result (no concatenated x is ever materialized).
    # Input normalization is pre-folded into w1/b1 on the host.
    h1 = jnp.dot(s_ref[...], w1s_ref[...], preferred_element_type=jnp.float32)
    h1 = h1 + jnp.dot(a_ref[...], w1a_ref[...], preferred_element_type=jnp.float32)
    h1 = h1 + jnp.dot(sp_ref[...], w1sp_ref[...], preferred_element_type=jnp.float32)
    h1 = jnp.maximum(h1 + b1_ref[...], 0.0)

    # Layer 2: bf16 MXU path, f32 accumulate.
    h2 = jnp.dot(h1.astype(w2_ref.dtype), w2_ref[...],
                 preferred_element_type=jnp.float32)
    h2 = jnp.maximum(h2 + b2_ref[...], 0.0)

    # Output head (H -> 1): VPU broadcast-multiply + XLU lane reduce instead of
    # a nearly empty MXU pass. out_scale/out_shift are folded into w3/b3.
    head = h2 * w3_ref[...]                          # (tile_b, H)   VPU
    row = jnp.sum(head, axis=-1)                     # (tile_b,)     XLU lane reduce
    o_ref[...] = row.reshape(1, -1) + b3_ref[...]    # lane-dense (1, tile_b) store


def reward_net_forward(s, a, sp, params, *, tile_b=1024):
    """Pallas implementation of RewardNet.forward.

    params: dict with keys
        s_shift, s_scale, a_shift, a_scale, sp_shift, sp_scale,
        w1, b1, w2, b2, w3, b3, out_shift, out_scale
    """
    B = s.shape[0]
    d_s, d_a, d_sp = s.shape[-1], a.shape[-1], sp.shape[-1]
    H = params["w1"].shape[1]
    f32, bf16 = jnp.float32, jnp.bfloat16

    # ---- host-side folds (one-time, tiny; keeps out_scale/out_shift traceable) ----
    shift = jnp.concatenate([params["s_shift"], params["a_shift"],
                             params["sp_shift"]], axis=-1).astype(f32)
    scale = jnp.concatenate([params["s_scale"], params["a_scale"],
                             params["sp_scale"]], axis=-1).astype(f32)
    inv = 1.0 / (scale + 1e-8)
    w1 = params["w1"].astype(f32) * inv[:, None]                        # norm folded
    b1 = params["b1"].astype(f32) - (shift * inv) @ params["w1"].astype(f32)

    out_scale = jnp.asarray(params["out_scale"], f32) + 1e-8
    out_shift = jnp.asarray(params["out_shift"], f32)
    w3 = params["w3"].astype(f32) * out_scale                           # affine folded
    b3 = params["b3"].astype(f32) * out_scale + out_shift

    w1s = w1[:d_s].astype(bf16)
    w1a = w1[d_s:d_s + d_a].astype(bf16)
    w1sp = w1[d_s + d_a:].astype(bf16)
    w2 = params["w2"].astype(bf16)
    b1 = b1.reshape(1, H)
    b2 = params["b2"].astype(f32).reshape(1, H)
    w3_row = w3.reshape(1, H)
    b3 = b3.reshape(1, 1)

    # ---- batch tiling: big tiles to amortize the ~0.35 us/step grid overhead ----
    tile_b = max(8, min(tile_b, _round_up(B, 8)))
    if tile_b < B:                      # multi-tile: lane-dense out block -> 128-mult
        tile_b = _round_up(tile_b, 128)
    B_pad = _round_up(B, tile_b)
    num_tiles = B_pad // tile_b
    # VMEM/step: ~13 KB of weights + 2x bf16 input tiles (~160 KB at tile_b=1024)
    # -> far under the 32 MiB default scoped limit on v5e/v6e/v7x.

    def prep(x):
        x = x.astype(bf16)
        if B_pad != B:
            x = jnp.pad(x, ((0, B_pad - B), (0, 0)))
        return x

    s_p, a_p, sp_p = prep(s), prep(a), prep(sp)

    full = lambda shape: pl.BlockSpec(shape, lambda i: (0, 0))
    batch_blk = lambda d: pl.BlockSpec((tile_b, d), lambda i: (i, 0))

    out_row = pl.pallas_call(
        reward_mlp_kernel,
        out_shape=jax.ShapeDtypeStruct((1, B_pad), jnp.float32),
        grid_spec=pltpu.PrefetchScalarGridSpec(
            num_scalar_prefetch=0,
            grid=(num_tiles,),
            in_specs=[
                batch_blk(d_s),          # s
                batch_blk(d_a),          # a
                batch_blk(d_sp),         # sp
                full((d_s, H)),          # w1 rows for s   (norm folded, bf16)
                full((d_a, H)),          # w1 rows for a
                full((d_sp, H)),         # w1 rows for sp
                full((1, H)),            # b1 (norm folded)
                full((H, H)),            # w2 (bf16)
                full((1, H)),            # b2
                full((1, H)),            # w3 row (out_scale folded)
                full((1, 1)),            # b3 (out affine folded)
            ],
            out_specs=pl.BlockSpec((1, tile_b), lambda i: (0, i)),   # lane-dense
        ),
        compiler_params=pltpu.CompilerParams(
            dimension_semantics=("parallel",)),   # grid>=2 shards across v7x cores
    )(s_p, a_p, sp_p, w1s, w1a, w1sp, b1, w2, b2, w3_row, b3)

    return out_row[0, :B].reshape(B, 1)


def init_params(key, state_dim, act_dim, hidden=(64, 64)):
    """Synthetic init mirroring nn.Linear shapes (uniform(+-1/sqrt(fan_in)))."""
    layer_sizes = (state_dim + act_dim + state_dim,) + hidden + (1,)
    keys = jax.random.split(key, 2 * (len(layer_sizes) - 1))
    params = {}
    for i in range(len(layer_sizes) - 1):
        fan_in, fan_out = layer_sizes[i], layer_sizes[i + 1]
        bound = 1.0 / np.sqrt(fan_in)
        params[f"w{i + 1}"] = jax.random.uniform(
            keys[2 * i], (fan_in, fan_out), jnp.float32, -bound, bound)
        params[f"b{i + 1}"] = jax.random.uniform(
            keys[2 * i + 1], (fan_out,), jnp.float32, -bound, bound)
    params["s_shift"] = jnp.zeros((state_dim,), jnp.float32)
    params["s_scale"] = jnp.ones((state_dim,), jnp.float32)
    params["a_shift"] = jnp.zeros((act_dim,), jnp.float32)
    params["a_scale"] = jnp.ones((act_dim,), jnp.float32)
    params["sp_shift"] = jnp.zeros((state_dim,), jnp.float32)
    params["sp_scale"] = jnp.ones((state_dim,), jnp.float32)
    params["out_shift"] = 0.0
    params["out_scale"] = 1.0
    return params


def reward_net_reference(s, a, sp, p):
    """Pure-JAX (f32) reference of RewardNet.forward for validation."""
    s = (s - p["s_shift"]) / (p["s_scale"] + 1e-8)
    a = (a - p["a_shift"]) / (p["a_scale"] + 1e-8)
    sp = (sp - p["sp_shift"]) / (p["sp_scale"] + 1e-8)
    out = jnp.concatenate([s, a, sp], axis=-1)
    out = jnp.maximum(out @ p["w1"] + p["b1"], 0.0)
    out = jnp.maximum(out @ p["w2"] + p["b2"], 0.0)
    out = out @ p["w3"] + p["b3"]
    return out * (p["out_scale"] + 1e-8) + p["out_shift"]


if __name__ == "__main__":
    state_dim, act_dim = 16, 8
    batch = 32

    key = jax.random.PRNGKey(0)
    k_s, k_a, k_sp, k_p, k_t = jax.random.split(key, 5)
    s = jax.random.normal(k_s, (batch, state_dim), jnp.float32)
    a = jax.random.normal(k_a, (batch, act_dim), jnp.float32)
    sp = jax.random.normal(k_sp, (batch, state_dim), jnp.float32)

    params = init_params(k_p, state_dim, act_dim, hidden=(64, 64))
    # Non-trivial transformations so the host-side folds are actually exercised.
    kt = jax.random.split(k_t, 6)
    params["s_shift"] = 0.3 * jax.random.normal(kt[0], (state_dim,), jnp.float32)
    params["s_scale"] = jax.random.uniform(kt[1], (state_dim,), jnp.float32, 0.5, 1.5)
    params["a_shift"] = 0.3 * jax.random.normal(kt[2], (act_dim,), jnp.float32)
    params["a_scale"] = jax.random.uniform(kt[3], (act_dim,), jnp.float32, 0.5, 1.5)
    params["sp_shift"] = 0.3 * jax.random.normal(kt[4], (state_dim,), jnp.float32)
    params["sp_scale"] = jax.random.uniform(kt[5], (state_dim,), jnp.float32, 0.5, 1.5)
    params["out_shift"] = 0.25
    params["out_scale"] = 1.7

    # Small single-tile case.
    out = jax.block_until_ready(reward_net_forward(s, a, sp, params))
    ref = reward_net_reference(s, a, sp, params)
    assert out.shape == (batch, 1)
    np.testing.assert_allclose(np.asarray(out), np.asarray(ref),
                               rtol=5e-2, atol=5e-2)   # bf16 inputs/weights

    # Multi-tile path: non-divisible batch (tail padding) + grid of 3 steps,
    # exercising the lane-dense (1, 128) output blocks and "parallel" grid.
    batch2 = 300
    s2 = jax.random.normal(jax.random.PRNGKey(1), (batch2, state_dim), jnp.float32)
    a2 = jax.random.normal(jax.random.PRNGKey(2), (batch2, act_dim), jnp.float32)
    sp2 = jax.random.normal(jax.random.PRNGKey(3), (batch2, state_dim), jnp.float32)
    out2 = jax.block_until_ready(
        reward_net_forward(s2, a2, sp2, params, tile_b=128))
    ref2 = reward_net_reference(s2, a2, sp2, params)
    assert out2.shape == (batch2, 1)
    np.testing.assert_allclose(np.asarray(out2), np.asarray(ref2),
                               rtol=5e-2, atol=5e-2)

    print("KERNEL_OK")
</pallas_src>

<mosaic_0001>
module attributes {stable_mosaic.version = 11 : i64} {
  func.func @reward_mlp_kernel(%arg0: i32, %arg1: memref<32x16xbf16, #tpu.memory_space<vmem>>, %arg2: memref<32x8xbf16, #tpu.memory_space<vmem>>, %arg3: memref<32x16xbf16, #tpu.memory_space<vmem>>, %arg4: memref<16x64xbf16, #tpu.memory_space<vmem>>, %arg5: memref<8x64xbf16, #tpu.memory_space<vmem>>, %arg6: memref<16x64xbf16, #tpu.memory_space<vmem>>, %arg7: memref<1x64xf32, #tpu.memory_space<vmem>>, %arg8: memref<64x64xbf16, #tpu.memory_space<vmem>>, %arg9: memref<1x64xf32, #tpu.memory_space<vmem>>, %arg10: memref<1x64xf32, #tpu.memory_space<vmem>>, %arg11: memref<1x1xf32, #tpu.memory_space<vmem>>, %arg12: memref<1x32xf32, #tpu.memory_space<vmem>>) attributes {dimension_semantics = [#tpu.dimension_semantics<parallel>], iteration_bounds = array<i64: 1>, scalar_prefetch = 0 : i64, scratch_operands = 0 : i64, tpu.core_type = #tpu.core_type<tc>, window_params = [{transform_indices = @transform_0, window_bounds = array<i64: 32, 16>}, {transform_indices = @transform_1, window_bounds = array<i64: 32, 8>}, {transform_indices = @transform_2, window_bounds = array<i64: 32, 16>}, {pipeline_mode = #tpu.pipeline_mode<synchronous>, transform_indices = @transform_3, window_bounds = array<i64: 16, 64>}, {pipeline_mode = #tpu.pipeline_mode<synchronous>, transform_indices = @transform_4, window_bounds = array<i64: 8, 64>}, {pipeline_mode = #tpu.pipeline_mode<synchronous>, transform_indices = @transform_5, window_bounds = array<i64: 16, 64>}, {pipeline_mode = #tpu.pipeline_mode<synchronous>, transform_indices = @transform_6, window_bounds = array<i64: 1, 64>}, {pipeline_mode = #tpu.pipeline_mode<synchronous>, transform_indices = @transform_7, window_bounds = array<i64: 64, 64>}, {pipeline_mode = #tpu.pipeline_mode<synchronous>, transform_indices = @transform_8, window_bounds = array<i64: 1, 64>}, {pipeline_mode = #tpu.pipeline_mode<synchronous>, transform_indices = @transform_9, window_bounds = array<i64: 1, 64>}, {pipeline_mode = #tpu.pipeline_mode<synchronous>, transform_indices = @transform_10, window_bounds = array<i64: 1, 1>}, {transform_indices = @transform_11, window_bounds = array<i64: 1, 32>}]} {
    %c0 = arith.constant 0 : index
    %c0_0 = arith.constant 0 : index
    %0 = vector.load %arg1[%c0, %c0_0] : memref<32x16xbf16, #tpu.memory_space<vmem>>, vector<32x16xbf16>
    %c0_1 = arith.constant 0 : index
    %c0_2 = arith.constant 0 : index
    %1 = vector.load %arg4[%c0_1, %c0_2] : memref<16x64xbf16, #tpu.memory_space<vmem>>, vector<16x64xbf16>
    %cst = arith.constant dense<0.000000e+00> : vector<32x64xf32>
    %2 = tpu.matmul %0, %1, %cst {dimension_numbers = #tpu.dot_dimension_numbers<[1], [0], [0], [1], [0, 0, 1, 1], [], []>} : vector<32x16xbf16>, vector<16x64xbf16>, vector<32x64xf32> -> vector<32x64xf32>
    %c0_3 = arith.constant 0 : index
    %c0_4 = arith.constant 0 : index
    %3 = vector.load %arg2[%c0_3, %c0_4] : memref<32x8xbf16, #tpu.memory_space<vmem>>, vector<32x8xbf16>
    %c0_5 = arith.constant 0 : index
    %c0_6 = arith.constant 0 : index
    %4 = vector.load %arg5[%c0_5, %c0_6] : memref<8x64xbf16, #tpu.memory_space<vmem>>, vector<8x64xbf16>
    %cst_7 = arith.constant dense<0.000000e+00> : vector<32x64xf32>
    %5 = tpu.matmul %3, %4, %cst_7 {dimension_numbers = #tpu.dot_dimension_numbers<[1], [0], [0], [1], [0, 0, 1, 1], [], []>} : vector<32x8xbf16>, vector<8x64xbf16>, vector<32x64xf32> -> vector<32x64xf32>
    %6 = arith.addf %2, %5 : vector<32x64xf32>
    %c0_8 = arith.constant 0 : index
    %c0_9 = arith.constant 0 : index
    %7 = vector.load %arg3[%c0_8, %c0_9] : memref<32x16xbf16, #tpu.memory_space<vmem>>, vector<32x16xbf16>
    %c0_10 = arith.constant 0 : index
    %c0_11 = arith.constant 0 : index
    %8 = vector.load %arg6[%c0_10, %c0_11] : memref<16x64xbf16, #tpu.memory_space<vmem>>, vector<16x64xbf16>
    %cst_12 = arith.constant dense<0.000000e+00> : vector<32x64xf32>
    %9 = tpu.matmul %7, %8, %cst_12 {dimension_numbers = #tpu.dot_dimension_numbers<[1], [0], [0], [1], [0, 0, 1, 1], [], []>} : vector<32x16xbf16>, vector<16x64xbf16>, vector<32x64xf32> -> vector<32x64xf32>
    %10 = arith.addf %6, %9 : vector<32x64xf32>
    %c0_13 = arith.constant 0 : index
    %c0_14 = arith.constant 0 : index
    %11 = vector.load %arg7[%c0_13, %c0_14] : memref<1x64xf32, #tpu.memory_space<vmem>>, vector<1x64xf32>
    %12 = vector.broadcast %11 : vector<1x64xf32> to vector<32x64xf32>
    %13 = arith.addf %10, %12 : vector<32x64xf32>
    %cst_15 = arith.constant 0.000000e+00 : f32
    %14 = vector.broadcast %cst_15 : f32 to vector<32x64xf32>
    %15 = arith.maximumf %13, %14 : vector<32x64xf32>
    %16 = arith.truncf %15 : vector<32x64xf32> to vector<32x64xbf16>
    %c0_16 = arith.constant 0 : index
    %c0_17 = arith.constant 0 : index
    %17 = vector.load %arg8[%c0_16, %c0_17] : memref<64x64xbf16, #tpu.memory_space<vmem>>, vector<64x64xbf16>
    %cst_18 = arith.constant dense<0.000000e+00> : vector<32x64xf32>
    %18 = tpu.matmul %16, %17, %cst_18 {dimension_numbers = #tpu.dot_dimension_numbers<[1], [0], [0], [1], [0, 0, 1, 1], [], []>} : vector<32x64xbf16>, vector<64x64xbf16>, vector<32x64xf32> -> vector<32x64xf32>
    %c0_19 = arith.constant 0 : index
    %c0_20 = arith.constant 0 : index
    %19 = vector.load %arg9[%c0_19, %c0_20] : memref<1x64xf32, #tpu.memory_space<vmem>>, vector<1x64xf32>
    %20 = vector.broadcast %19 : vector<1x64xf32> to vector<32x64xf32>
    %21 = arith.addf %18, %20 : vector<32x64xf32>
    %cst_21 = arith.constant 0.000000e+00 : f32
    %22 = vector.broadcast %cst_21 : f32 to vector<32x64xf32>
    %23 = arith.maximumf %21, %22 : vector<32x64xf32>
    %c0_22 = arith.constant 0 : index
    %c0_23 = arith.constant 0 : index
    %24 = vector.load %arg10[%c0_22, %c0_23] : memref<1x64xf32, #tpu.memory_space<vmem>>, vector<1x64xf32>
    %25 = vector.broadcast %24 : vector<1x64xf32> to vector<32x64xf32>
    %26 = arith.mulf %23, %25 : vector<32x64xf32>
    %cst_24 = arith.constant dense<0.000000e+00> : vector<32xf32>
    %27 = vector.multi_reduction <add>, %26, %cst_24 [1] : vector<32x64xf32> to vector<32xf32>
    %28 = vector.shape_cast %27 : vector<32xf32> to vector<1x32xf32>
    %c0_25 = arith.constant 0 : index
    %c0_26 = arith.constant 0 : index
    %29 = vector.load %arg11[%c0_25, %c0_26] : memref<1x1xf32, #tpu.memory_space<vmem>>, vector<1x1xf32>
    %30 = vector.broadcast %29 : vector<1x1xf32> to vector<1x32xf32>
    %31 = arith.addf %28, %30 : vector<1x32xf32>
    %c0_27 = arith.constant 0 : index
    %c0_28 = arith.constant 0 : index
    %32 = vector.load %arg12[%c0_27, %c0_28] : memref<1x32xf32, #tpu.memory_space<vmem>>, vector<1x32xf32>
    tpu.vector_store %arg12[%c0_27, %c0_28], %31 {strides = array<i32>} : memref<1x32xf32, #tpu.memory_space<vmem>>, vector<1x32xf32>,
    return
  }
  func.func @transform_0(%arg0: i32) -> (i32, i32) {
    %c0_i32 = arith.constant 0 : i32
    %c0_i32_0 = arith.constant 0 : i32
    return %arg0, %c0_i32 : i32, i32
  }
  func.func @transform_1(%arg0: i32) -> (i32, i32) {
    %c0_i32 = arith.constant 0 : i32
    %c0_i32_0 = arith.constant 0 : i32
    return %arg0, %c0_i32 : i32, i32
  }
  func.func @transform_2(%arg0: i32) -> (i32, i32) {
    %c0_i32 = arith.constant 0 : i32
    %c0_i32_0 = arith.constant 0 : i32
    return %arg0, %c0_i32 : i32, i32
  }
  func.func @transform_3(%arg0: i32) -> (i32, i32) {
    %c0_i32 = arith.constant 0 : i32
    %c0_i32_0 = arith.constant 0 : i32
    %c0_i32_1 = arith.constant 0 : i32
    return %c0_i32, %c0_i32_0 : i32, i32
  }
  func.func @transform_4(%arg0: i32) -> (i32, i32) {
    %c0_i32 = arith.constant 0 : i32
    %c0_i32_0 = arith.constant 0 : i32
    %c0_i32_1 = arith.constant 0 : i32
    return %c0_i32, %c0_i32_0 : i32, i32
  }
  func.func @transform_5(%arg0: i32) -> (i32, i32) {
    %c0_i32 = arith.constant 0 : i32
    %c0_i32_0 = arith.constant 0 : i32
    %c0_i32_1 = arith.constant 0 : i32
    return %c0_i32, %c0_i32_0 : i32, i32
  }
  func.func @transform_6(%arg0: i32) -> (i32, i32) {
    %c0_i32 = arith.constant 0 : i32
    %c0_i32_0 = arith.constant 0 : i32
    %c0_i32_1 = arith.constant 0 : i32
    return %c0_i32, %c0_i32_0 : i32, i32
  }
  func.func @transform_7(%arg0: i32) -> (i32, i32) {
    %c0_i32 = arith.constant 0 : i32
    %c0_i32_0 = arith.constant 0 : i32
    %c0_i32_1 = arith.constant 0 : i32
    return %c0_i32, %c0_i32_0 : i32, i32
  }
  func.func @transform_8(%arg0: i32) -> (i32, i32) {
    %c0_i32 = arith.constant 0 : i32
    %c0_i32_0 = arith.constant 0 : i32
    %c0_i32_1 = arith.constant 0 : i32
    return %c0_i32, %c0_i32_0 : i32, i32
  }
  func.func @transform_9(%arg0: i32) -> (i32, i32) {
    %c0_i32 = arith.constant 0 : i32
    %c0_i32_0 = arith.constant 0 : i32
    %c0_i32_1 = arith.constant 0 : i32
    return %c0_i32, %c0_i32_0 : i32, i32
  }
  func.func @transform_10(%arg0: i32) -> (i32, i32) {
    %c0_i32 = arith.constant 0 : i32
    %c0_i32_0 = arith.constant 0 : i32
    %c0_i32_1 = arith.constant 0 : i32
    return %c0_i32, %c0_i32_0 : i32, i32
  }
  func.func @transform_11(%arg0: i32) -> (i32, i32) {
    %c0_i32 = arith.constant 0 : i32
    %c0_i32_0 = arith.constant 0 : i32
    return %c0_i32, %arg0 : i32, i32
  }
}

</mosaic_0001>

<llo_original>
// kernel: tpu_custom_call.1
$region0: #{tpu_custom_call.1}
  #allocation0 [shape = 'u32[]', space=smem, size = 0x4, offset = 0x4, fixed_abs, tag = 'smem constant byte address 0x4 - core index']
  #allocation1 [shape = 'u32[144,128]{1,0:T(1,128)}', space=vmem, size = 0x12000, scoped, tag = 'internal scratch']
  #allocation2 [shape = 'f32[1,1]{1,0:T(1,128)S(1)}', space=vmem, size = 0x200, scoped, tag = 'scoped memory for tpu_custom_call.1']
  %s0 = inlined_call_operand.vmem [shape: bf16[32,16], index: 0, kind: input, shape index: {}]
  %s1 = inlined_call_operand.vmem [shape: bf16[32,8], index: 1, kind: input, shape index: {}]
  %s2 = inlined_call_operand.vmem [shape: bf16[32,16], index: 2, kind: input, shape index: {}]
  %s3 = inlined_call_operand.vmem [shape: bf16[16,64], index: 3, kind: input, shape index: {}]
  %s4 = inlined_call_operand.vmem [shape: bf16[8,64], index: 4, kind: input, shape index: {}]
  %s5 = inlined_call_operand.vmem [shape: bf16[16,64], index: 5, kind: input, shape index: {}]
  %s6 = inlined_call_operand.vmem [shape: f32[1,64], index: 6, kind: input, shape index: {}]
  %s7 = inlined_call_operand.vmem [shape: bf16[64,64], index: 7, kind: input, shape index: {}]
  %s8 = inlined_call_operand.vmem [shape: f32[1,64], index: 8, kind: input, shape index: {}]
  %s9 = inlined_call_operand.vmem [shape: f32[1,64], index: 9, kind: input, shape index: {}]
  %s10 = inlined_call_operand.<no memory space> [shape: f32[1,1], index: 10, kind: input, shape index: {}]
  %s11 = inlined_call_operand.hbm [shape: f32[1,32], index: 11, kind: output, shape index: {}]
  %s12 = sld [smem:[#allocation0]]
  $region54: #{tpu_custom_call.1} parent=0
    _
  %s14 = ssub.s32 1, %s12
  %s15 = scalar_select 0, %s14, %s12
  %v16 = vstv %s10
  %17 = vst [vmem:[#allocation2] sm:$0x1] %v16
  $region1: #{tpu_custom_call.1} parent=0
    #allocation3 [shape = 'u8[512]{0}', space=vmem, size = 0x400, scoped, tag = 'output window, operand 0, single buffered']
    #allocation4 [shape = 's32[1]{0}', space=sflag, size = 0x4, scoped, tag = 'scoped memory for tpu_custom_call.1']
    %18 = vsyncpa [#allocation4], 0
    // Predicated region
    $region2: #{tpu_custom_call.1} parent=1 // pred_check
      _
    $region3: #{tpu_custom_call.1} parent=1 // pred_check_branch
      %20 = sbr.rel (0) target = $region5
    $region4: #{tpu_custom_call.1} parent=1 // pred_region
      _
    $region5: #{tpu_custom_call.1} parent=1 // pred_fallthru
      _
    // Predicated region
    $region6: #{tpu_custom_call.1} parent=1 // pred_check
      _
    $region7: #{tpu_custom_call.1} parent=1 // pred_check_branch
      %22 = sbr.rel (0) target = $region9
    $region8: #{tpu_custom_call.1} parent=1 // pred_region
      _
    $region9: #{tpu_custom_call.1} parent=1 // pred_fallthru
      _
    // Predicated region
    $region10: #{tpu_custom_call.1} parent=1 // pred_check
      _
    $region11: #{tpu_custom_call.1} parent=1 // pred_check_branch
      %24 = sbr.rel (0) target = $region13
    $region12: #{tpu_custom_call.1} parent=1 // pred_region
      _
    $region13: #{tpu_custom_call.1} parent=1 // pred_fallthru
      _
    // Predicated region
    $region14: #{tpu_custom_call.1} parent=1 // pred_check
      _
    $region15: #{tpu_custom_call.1} parent=1 // pred_check_branch
      %26 = sbr.rel (0) target = $region17
    $region16: #{tpu_custom_call.1} parent=1 // pred_region
      _
    $region17: #{tpu_custom_call.1} parent=1 // pred_fallthru
      _
    // Predicated region
    $region18: #{tpu_custom_call.1} parent=1 // pred_check
      _
    $region19: #{tpu_custom_call.1} parent=1 // pred_check_branch
      %28 = sbr.rel (0) target = $region21
    $region20: #{tpu_custom_call.1} parent=1 // pred_region
      _
    $region21: #{tpu_custom_call.1} parent=1 // pred_fallthru
      _
    // Predicated region
    $region22: #{tpu_custom_call.1} parent=1 // pred_check
      _
    $region23: #{tpu_custom_call.1} parent=1 // pred_check_branch
      %30 = sbr.rel (0) target = $region25
    $region24: #{tpu_custom_call.1} parent=1 // pred_region
      _
    $region25: #{tpu_custom_call.1} parent=1 // pred_fallthru
      _
    // Predicated region
    $region26: #{tpu_custom_call.1} parent=1 // pred_check
      _
    $region27: #{tpu_custom_call.1} parent=1 // pred_check_branch
      %32 = sbr.rel (0) target = $region29
    $region28: #{tpu_custom_call.1} parent=1 // pred_region
      _
    $region29: #{tpu_custom_call.1} parent=1 // pred_fallthru
      _
    // Predicated region
    $region30: #{tpu_custom_call.1} parent=1 // pred_check
      _
    $region31: #{tpu_custom_call.1} parent=1 // pred_check_branch
      %34 = sbr.rel (0) target = $region33
    $region32: #{tpu_custom_call.1} parent=1 // pred_region
      _
    $region33: #{tpu_custom_call.1} parent=1 // pred_fallthru
      _
    // Predicated region
    $region34: #{tpu_custom_call.1} parent=1 // pred_check
      _
    $region35: #{tpu_custom_call.1} parent=1 // pred_check_branch
      %36 = sbr.rel (0) target = $region37
    $region36: #{tpu_custom_call.1} parent=1 // pred_region
      _
    $region37: #{tpu_custom_call.1} parent=1 // pred_fallthru
      _
    // Predicated region
    $region38: #{tpu_custom_call.1} parent=1 // pred_check
      _
    $region39: #{tpu_custom_call.1} parent=1 // pred_check_branch
      %38 = sbr.rel (0) target = $region41
    $region40: #{tpu_custom_call.1} parent=1 // pred_region
      _
    $region41: #{tpu_custom_call.1} parent=1 // pred_fallthru
      _
    // Predicated region
    $region42: #{tpu_custom_call.1} parent=1 // pred_check
      _
    $region43: #{tpu_custom_call.1} parent=1 // pred_check_branch
      %40 = sbr.rel (0) target = $region45
    $region44: #{tpu_custom_call.1} parent=1 // pred_region
      _
    $region45: #{tpu_custom_call.1} parent=1 // pred_fallthru
      _
    %v42 = vld [vmem:[%s0] sm:$0xf]
    %v43 = vld [vmem:[%s0 + $0x4] sm:$0xf]
    %v44 = vld [vmem:[%s0 + $0x8] sm:$0xf]
    %v45 = vld [vmem:[%s0 + $0xc] sm:$0xf]
    %v46 = vld [vmem:[%s3] sm:$0xf]
    %v47 = vld [vmem:[%s3 + $0x4] sm:$0xf]
    %v48 = vld [vmem:[%s1] sm:$0xf]
    %v49 = vld [vmem:[%s1 + $0x4] sm:$0xf]
    %v50 = vld [vmem:[%s1 + $0x8] sm:$0xf]
    %v51 = vld [vmem:[%s1 + $0xc] sm:$0xf]
    %v52 = vld [vmem:[%s4] sm:$0xf]
    %v57 = vunpack.c.l.b16 %v48
    %v58 = vunpack.c.l.b16 %v49
    %v59 = vunpack.c.l.b16 %v50
    %v60 = vunpack.c.l.b16 %v51
    %v61 = vpack.c.b16 %v58, %v57
    %v62 = vpack.c.b16 %v60, %v59
    %vm63 = vcmask 64512
    %v65 = vsel %vm63, %v61, 0
    %v68 = vsel %vm63, %v62, 0
    %vm70 = vcmask 1043456
    %v72 = vsel %vm70, %v52, 0
    %74 = vmatprep.subr.bf16.mxu0 0
    %75 = vmatpush1.bf16.msra.mxu0 %v72
    %76 = vmatprep.subr.bf16.mxu0 0
    %77 = vmatpush1.bf16.msra.mxu0 0
    %78 = vmatprep.subr.bf16.mxu0 0
    %79 = vmatpush1.bf16.msra.mxu0 0
    %80 = vmatprep.subr.bf16.mxu0 0
    %81 = vmatpush1.bf16.msra.mxu0 0
    %82 = vmatprep.subr.bf16.mxu0 0
    %83 = vmatpush1.bf16.msra.mxu0 0
    %84 = vmatprep.subr.bf16.mxu0 0
    %85 = vmatpush1.bf16.msra.mxu0 0
    %86 = vmatprep.subr.bf16.mxu0 0
    %87 = vmatpush1.bf16.msra.mxu0 0
    %88 = vmatprep.subr.bf16.mxu0 0
    %89 = vmatpush1.bf16.msra.mxu0 0
    %90 = vmatprep.subr.bf16.mxu0 0
    %91 = vmatpush1.bf16.msra.mxu0 0
    %92 = vmatprep.subr.bf16.mxu0 0
    %93 = vmatpush1.bf16.msra.mxu0 0
    %94 = vmatprep.subr.bf16.mxu0 0
    %95 = vmatpush1.bf16.msra.mxu0 0
    %96 = vmatprep.subr.bf16.mxu0 0
    %97 = vmatpush1.bf16.msra.mxu0 0
    %98 = vmatprep.subr.bf16.mxu0 0
    %99 = vmatpush1.bf16.msra.mxu0 0
    %100 = vmatprep.subr.bf16.mxu0 0
    %101 = vmatpush1.bf16.msra.mxu0 0
    %102 = vmatprep.subr.bf16.mxu0 0
    %103 = vmatpush1.bf16.msra.mxu0 0
    %104 = vmatprep.subr.bf16.mxu0 0
    %105 = vmatpush1.bf16.msra.mxu0 0
    %106 = vmatprep.mubr.bf16.mxu0 0
    %107 = vmatmul.mubr.bf16.gmra.mrb[0].mxu0 %v65
    %v108 = vpop.f32.mrb[0].mxu0
    %v109 = vadd.f32 0.0, %v108
    %v110 = vpop.f32.mrb[0].mxu0
    %v111 = vpop.f32.mrb[0].mxu0
    %v112 = vadd.f32 0.0, %v111
    %v113 = vpop.f32.mrb[0].mxu0
    %114 = vmatprep.mubr.bf16.mxu0 0
    %115 = vmatmul.mubr.bf16.gmra.mrb[0].mxu0 %v68
    %v116 = vpop.f32.mrb[0].mxu0
    %v117 = vadd.f32 0.0, %v116
    %v118 = vpop.f32.mrb[0].mxu0
    %v119 = vpop.f32.mrb[0].mxu0
    %v120 = vadd.f32 0.0, %v119
    %v121 = vpop.f32.mrb[0].mxu0
    %122 = vdwg.mxu0
    %v127 = vunpack.c.l.b16 %v42
    %v128 = vunpack.c.l.b16 %v43
    %v129 = vunpack.c.l.b16 %v44
    %v130 = vunpack.c.l.b16 %v45
    %v131 = vpack.c.b16 %v128, %v127
    %v132 = vpack.c.b16 %v130, %v129
    %v135 = vunpack.c.l.b16 %v46
    %v136 = vunpack.c.l.b16 %v47
    %v137 = vpack.c.b16 %v136, %v135
    %vm139 = vcmask 130048
    %v141 = vsel %vm139, %v131, 0
    %v144 = vsel %vm139, %v132, 0
    %146 = vmatprep.subr.bf16.mxu0 0
    %147 = vmatpush1.bf16.msra.mxu0 %v137
    %148 = vmatprep.subr.bf16.mxu0 0
    %149 = vmatpush1.bf16.msra.mxu0 0
    %150 = vmatprep.subr.bf16.mxu0 0
    %151 = vmatpush1.bf16.msra.mxu0 0
    %152 = vmatprep.subr.bf16.mxu0 0
    %153 = vmatpush1.bf16.msra.mxu0 0
    %154 = vmatprep.subr.bf16.mxu0 0
    %155 = vmatpush1.bf16.msra.mxu0 0
    %156 = vmatprep.subr.bf16.mxu0 0
    %157 = vmatpush1.bf16.msra.mxu0 0
    %158 = vmatprep.subr.bf16.mxu0 0
    %159 = vmatpush1.bf16.msra.mxu0 0
    %160 = vmatprep.subr.bf16.mxu0 0
    %161 = vmatpush1.bf16.msra.mxu0 0
    %162 = vmatprep.subr.bf16.mxu0 0
    %163 = vmatpush1.bf16.msra.mxu0 0
    %164 = vmatprep.subr.bf16.mxu0 0
    %165 = vmatpush1.bf16.msra.mxu0 0
    %166 = vmatprep.subr.bf16.mxu0 0
    %167 = vmatpush1.bf16.msra.mxu0 0
    %168 = vmatprep.subr.bf16.mxu0 0
    %169 = vmatpush1.bf16.msra.mxu0 0
    %170 = vmatprep.subr.bf16.mxu0 0
    %171 = vmatpush1.bf16.msra.mxu0 0
    %172 = vmatprep.subr.bf16.mxu0 0
    %173 = vmatpush1.bf16.msra.mxu0 0
    %174 = vmatprep.subr.bf16.mxu0 0
    %175 = vmatpush1.bf16.msra.mxu0 0
    %176 = vmatprep.subr.bf16.mxu0 0
    %177 = vmatpush1.bf16.msra.mxu0 0
    %178 = vmatprep.mubr.bf16.mxu0 0
    %179 = vmatmul.mubr.bf16.gmra.mrb[0].mxu0 %v141
    %v180 = vpop.f32.mrb[0].mxu0
    %v181 = vadd.f32 %v109, %v180
    %v182 = vpop.f32.mrb[0].mxu0
    %v183 = vpop.f32.mrb[0].mxu0
    %v184 = vadd.f32 %v112, %v183
    %v185 = vpop.f32.mrb[0].mxu0
    %186 = vmatprep.mubr.bf16.mxu0 0
    %187 = vmatmul.mubr.bf16.gmra.mrb[0].mxu0 %v144
    %v188 = vpop.f32.mrb[0].mxu0
    %v189 = vadd.f32 %v117, %v188
    %v190 = vpop.f32.mrb[0].mxu0
    %v191 = vpop.f32.mrb[0].mxu0
    %v192 = vadd.f32 %v120, %v191
    %v193 = vpop.f32.mrb[0].mxu0
    %194 = vdwg.mxu0
    %v195 = vld [vmem:[%s2] sm:$0xf]
    %v196 = vld [vmem:[%s2 + $0x4] sm:$0xf]
    %v197 = vld [vmem:[%s2 + $0x8] sm:$0xf]
    %v198 = vld [vmem:[%s2 + $0xc] sm:$0xf]
    %v199 = vld [vmem:[%s5] sm:$0xf]
    %v200 = vld [vmem:[%s5 + $0x4] sm:$0xf]
    %v205 = vunpack.c.l.b16 %v195
    %v206 = vunpack.c.l.b16 %v196
    %v207 = vunpack.c.l.b16 %v197
    %v208 = vunpack.c.l.b16 %v198
    %v209 = vpack.c.b16 %v206, %v205
    %v210 = vpack.c.b16 %v208, %v207
    %v213 = vunpack.c.l.b16 %v199
    %v214 = vunpack.c.l.b16 %v200
    %v215 = vpack.c.b16 %v214, %v213
    %v218 = vsel %vm139, %v209, 0
    %v221 = vsel %vm139, %v210, 0
    %223 = vmatprep.subr.bf16.mxu0 0
    %224 = vmatpush1.bf16.msra.mxu0 %v215
    %225 = vmatprep.subr.bf16.mxu0 0
    %226 = vmatpush1.bf16.msra.mxu0 0
    %227 = vmatprep.subr.bf16.mxu0 0
    %228 = vmatpush1.bf16.msra.mxu0 0
    %229 = vmatprep.subr.bf16.mxu0 0
    %230 = vmatpush1.bf16.msra.mxu0 0
    %231 = vmatprep.subr.bf16.mxu0 0
    %232 = vmatpush1.bf16.msra.mxu0 0
    %233 = vmatprep.subr.bf16.mxu0 0
    %234 = vmatpush1.bf16.msra.mxu0 0
    %235 = vmatprep.subr.bf16.mxu0 0
    %236 = vmatpush1.bf16.msra.mxu0 0
    %237 = vmatprep.subr.bf16.mxu0 0
    %238 = vmatpush1.bf16.msra.mxu0 0
    %239 = vmatprep.subr.bf16.mxu0 0
    %240 = vmatpush1.bf16.msra.mxu0 0
    %241 = vmatprep.subr.bf16.mxu0 0
    %242 = vmatpush1.bf16.msra.mxu0 0
    %243 = vmatprep.subr.bf16.mxu0 0
    %244 = vmatpush1.bf16.msra.mxu0 0
    %245 = vmatprep.subr.bf16.mxu0 0
    %246 = vmatpush1.bf16.msra.mxu0 0
    %247 = vmatprep.subr.bf16.mxu0 0
    %248 = vmatpush1.bf16.msra.mxu0 0
    %249 = vmatprep.subr.bf16.mxu0 0
    %250 = vmatpush1.bf16.msra.mxu0 0
    %251 = vmatprep.subr.bf16.mxu0 0
    %252 = vmatpush1.bf16.msra.mxu0 0
    %253 = vmatprep.subr.bf16.mxu0 0
    %254 = vmatpush1.bf16.msra.mxu0 0
    %255 = vmatprep.mubr.bf16.mxu0 0
    %256 = vmatmul.mubr.bf16.gmra.mrb[0].mxu0 %v218
    %v257 = vpop.f32.mrb[0].mxu0
    %v258 = vadd.f32 0.0, %v257
    %v259 = vpop.f32.mrb[0].mxu0
    %v260 = vpop.f32.mrb[0].mxu0
    %v261 = vadd.f32 0.0, %v260
    %v262 = vpop.f32.mrb[0].mxu0
    %263 = vmatprep.mubr.bf16.mxu0 0
    %264 = vmatmul.mubr.bf16.gmra.mrb[0].mxu0 %v221
    %v265 = vpop.f32.mrb[0].mxu0
    %v266 = vadd.f32 0.0, %v265
    %v267 = vpop.f32.mrb[0].mxu0
    %v268 = vpop.f32.mrb[0].mxu0
    %v269 = vadd.f32 0.0, %v268
    %v270 = vpop.f32.mrb[0].mxu0
    %271 = vdwg.mxu0
    %v272 = vadd.f32 %v181, %v258
    %v273 = vadd.f32 %v184, %v261
    %v274 = vadd.f32 %v189, %v266
    %v275 = vadd.f32 %v192, %v269
    %v276 = vld [vmem:[%s6] sm:$0x1]
    %v278 = vlaneseq
    %v279 = vshrl.u32 %v278, 7
    %v280 = vsub.s32 0, %v279
    %v281 = vrot.slane %v276, %v280
    %v283 = vadd.f32 %v272, %v281
    %v284 = vadd.f32 %v273, %v281
    %v285 = vadd.f32 %v274, %v281
    %v286 = vadd.f32 %v275, %v281
    %v287 = vmax.f32 %v283, 0.0
    %v288 = vmax.f32 %v284, 0.0
    %v289 = vmax.f32 %v285, 0.0
    %v290 = vmax.f32 %v286, 0.0
    %v291 = vpack.c.bf16 %v288, %v287
    %v292 = vpack.c.bf16 %v290, %v289
    %v293 = vld [vmem:[%s7] sm:$0xf]
    %v294 = vld [vmem:[%s7 + $0x4] sm:$0xf]
    %v295 = vld [vmem:[%s7 + $0x8] sm:$0xf]
    %v296 = vld [vmem:[%s7 + $0xc] sm:$0xf]
    %v297 = vld [vmem:[%s7 + $0x10] sm:$0xf]
    %v298 = vld [vmem:[%s7 + $0x14] sm:$0xf]
    %v299 = vld [vmem:[%s7 + $0x18] sm:$0xf]
    %v300 = vld [vmem:[%s7 + $0x1c] sm:$0xf]
    %v301 = vld [vmem:[%s8] sm:$0x1]
    %v303 = vlaneseq
    %v304 = vshrl.u32 %v303, 7
    %v305 = vsub.s32 0, %v304
    %v306 = vrot.slane %v301, %v305
    %v316 = vunpack.c.l.b16 %v293
    %v317 = vunpack.c.l.b16 %v294
    %v318 = vunpack.c.l.b16 %v295
    %v319 = vunpack.c.l.b16 %v296
    %v320 = vunpack.c.l.b16 %v297
    %v321 = vunpack.c.l.b16 %v298
    %v322 = vunpack.c.l.b16 %v299
    %v323 = vunpack.c.l.b16 %v300
    %v324 = vpack.c.b16 %v317, %v316
    %v325 = vpack.c.b16 %v319, %v318
    %v326 = vpack.c.b16 %v321, %v320
    %v327 = vpack.c.b16 %v323, %v322
    %vm332 = vcmask 523264
    %v334 = vsel %vm332, %v291, 0
    %v337 = vsel %vm332, %v292, 0
    %339 = vmatprep.subr.bf16.mxu0 0
    %340 = vmatpush1.bf16.msra.mxu0 %v324
    %341 = vmatprep.subr.bf16.mxu0 0
    %342 = vmatpush1.bf16.msra.mxu0 %v325
    %343 = vmatprep.subr.bf16.mxu0 0
    %344 = vmatpush1.bf16.msra.mxu0 %v326
    %345 = vmatprep.subr.bf16.mxu0 0
    %346 = vmatpush1.bf16.msra.mxu0 %v327
    %347 = vmatprep.subr.bf16.mxu0 0
    %348 = vmatpush1.bf16.msra.mxu0 0
    %349 = vmatprep.subr.bf16.mxu0 0
    %350 = vmatpush1.bf16.msra.mxu0 0
    %351 = vmatprep.subr.bf16.mxu0 0
    %352 = vmatpush1.bf16.msra.mxu0 0
    %353 = vmatprep.subr.bf16.mxu0 0
    %354 = vmatpush1.bf16.msra.mxu0 0
    %355 = vmatprep.subr.bf16.mxu0 0
    %356 = vmatpush1.bf16.msra.mxu0 0
    %357 = vmatprep.subr.bf16.mxu0 0
    %358 = vmatpush1.bf16.msra.mxu0 0
    %359 = vmatprep.subr.bf16.mxu0 0
    %360 = vmatpush1.bf16.msra.mxu0 0
    %361 = vmatprep.subr.bf16.mxu0 0
    %362 = vmatpush1.bf16.msra.mxu0 0
    %363 = vmatprep.subr.bf16.mxu0 0
    %364 = vmatpush1.bf16.msra.mxu0 0
    %365 = vmatprep.subr.bf16.mxu0 0
    %366 = vmatpush1.bf16.msra.mxu0 0
    %367 = vmatprep.subr.bf16.mxu0 0
    %368 = vmatpush1.bf16.msra.mxu0 0
    %369 = vmatprep.subr.bf16.mxu0 0
    %370 = vmatpush1.bf16.msra.mxu0 0
    %371 = vmatprep.mubr.bf16.mxu0 0
    %372 = vmatmul.mubr.bf16.gmra.mrb[0].mxu0 %v334
    %v373 = vpop.f32.mrb[0].mxu0
    %v374 = vadd.f32 %v306, %v373
    %v375 = vpop.f32.mrb[0].mxu0
    %v376 = vpop.f32.mrb[0].mxu0
    %v377 = vadd.f32 %v306, %v376
    %v378 = vpop.f32.mrb[0].mxu0
    %379 = vmatprep.mubr.bf16.mxu0 0
    %380 = vmatmul.mubr.bf16.gmra.mrb[0].mxu0 %v337
    %v381 = vpop.f32.mrb[0].mxu0
    %v382 = vadd.f32 %v306, %v381
    %v383 = vpop.f32.mrb[0].mxu0
    %v384 = vpop.f32.mrb[0].mxu0
    %v385 = vadd.f32 %v306, %v384
    %v386 = vpop.f32.mrb[0].mxu0
    %387 = vdwg.mxu0
    %v388 = vmax.f32 %v374, 0.0
    %v389 = vmax.f32 %v377, 0.0
    %v390 = vmax.f32 %v382, 0.0
    %v391 = vmax.f32 %v385, 0.0
    %v392 = vld [vmem:[%s9] sm:$0x1]
    %v394 = vlaneseq
    %v395 = vshrl.u32 %v394, 7
    %v396 = vsub.s32 0, %v395
    %v397 = vrot.slane %v392, %v396
    %v399 = vmul.f32 %v388, %v397
    %v400 = vmul.f32 %v389, %v397
    %v401 = vmul.f32 %v390, %v397
    %v402 = vmul.f32 %v391, %v397
    %v403 = vsel %vm332, %v399, 0.0
    %404 = vadd.xlane.f32.xlu0 %v403
    %v405 = vpop.xlane.xlu0 %404
    %v406 = vsel %vm332, %v400, 0.0
    %407 = vadd.xlane.f32.xlu0 %v406
    %v408 = vpop.xlane.xlu0 %407
    %v409 = vsel %vm332, %v401, 0.0
    %410 = vadd.xlane.f32.xlu0 %v409
    %v411 = vpop.xlane.xlu0 %410
    %v412 = vsel %vm332, %v402, 0.0
    %413 = vadd.xlane.f32.xlu0 %v412
    %v414 = vpop.xlane.xlu0 %413
    %v415 = vld [vmem:[#allocation2] sm:$0x1]
    %417 = vset.pattern.permute.xlu0 0
    %418 = vperm.xlu0 %417, %v415
    %v419 = vpop.permute.xlu0 %418
    %v421 = vlaneseq
    %v422 = vshrl.u32 %v421, 7
    %v423 = vsub.s32 0, %v422
    %v424 = vrot.slane %v419, %v423
    %v425 = vadd.f32 %v405, %v424
    %v426 = vadd.f32 %v408, %v424
    %v427 = vadd.f32 %v411, %v424
    %v428 = vadd.f32 %v414, %v424
    %v433 = vlaneseq
    %v434 = vand.u32 %v433, 127
    %v435 = vlaneseq
    %v436 = vshrl.u32 %v435, 7
    %v437 = vsub.s32 %v434, %v436
    %v438 = vrot.slane %v425, %v437
    %v439 = vadd.s32 %v434, 4294967288
    %v440 = vlaneseq
    %v441 = vshrl.u32 %v440, 7
    %v442 = vsub.s32 %v439, %v441
    %v443 = vrot.slane %v426, %v442
    %vm444 = vcmask 130112
    %v445 = vsel %vm444, %v443, %v438
    %v446 = vadd.s32 %v434, 4294967280
    %v447 = vlaneseq
    %v448 = vshrl.u32 %v447, 7
    %v449 = vsub.s32 %v446, %v448
    %v450 = vrot.slane %v427, %v449
    %vm451 = vcmask 195712
    %v452 = vsel %vm451, %v450, %v445
    %v453 = vadd.s32 %v434, 4294967272
    %v454 = vlaneseq
    %v455 = vshrl.u32 %v454, 7
    %v456 = vsub.s32 %v453, %v455
    %v457 = vrot.slane %v428, %v456
    %vm458 = vcmask 261312
    %v459 = vsel %vm458, %v457, %v452
    %vm461 = vcmask 253952
    %462 = vst.msk [vmem:[#allocation3] sm:$0x1] %vm461, %v459
    // Predicated region
    $region46: #{tpu_custom_call.1} parent=1 // pred_check
      _
    $region47: #{tpu_custom_call.1} parent=1 // pred_check_branch
      %464 = sbr.rel (0) target = $region49
    $region48: #{tpu_custom_call.1} parent=1 // pred_region
      %s466 = ssub.s32 16, 16
      %467 = vsyncadd [#allocation4], %s466
      %s469 = sshll.u32 [#allocation3], 4
      %s470 = int_to_ptr.vmem [resolvable:$true] %s469
      %472 = dma.vmem_to_hbm [thread:$0]  %s470, 16, %s11, [#allocation4]
    $region49: #{tpu_custom_call.1} parent=1 // pred_fallthru
      _
    // Predicated region
    $region50: #{tpu_custom_call.1} parent=1 // pred_check
      _
    $region51: #{tpu_custom_call.1} parent=1 // pred_check_branch
      %474 = sbr.rel (0) target = $region53
    $region52: #{tpu_custom_call.1} parent=1 // pred_region
      %475 = dma.done [#allocation4], 16
    $region53: #{tpu_custom_call.1} parent=1 // pred_fallthru
      _
    %476 = vsyncpa [#allocation4], 1

</llo_original>
